<compile_context>
chip_gen: v6e
topology: v6e:2x2x1
jax: 0.10.0
libtpu: 0.0.40
codegen_flags: <defaults>
</compile_context>

<pallas_src>
import math

import jax
import jax.numpy as jnp
from jax import lax
from jax.experimental import pallas as pl
from jax.experimental.pallas import tpu as pltpu

NUM_FEATURES = 100
HIDDEN = 32
NUM_CLASSES = 2

F_PAD = 128        # feature dim padded to lane width
OUT_PAD = 128      # lane-dense output width (real logits in [:, :NUM_CLASSES])
NEG = -1e30        # mask sentinel (finite: avoids inf-inf NaNs in online softmax)


# -----------------------------------------------------------------------------
# Kernel A: lin1 + relu + row-wise L2 normalize
# -----------------------------------------------------------------------------
def lin1_norm_kernel(x_ref, w1_ref, b1_ref, h_ref, xn_ref):
    h = jnp.dot(x_ref[...], w1_ref[...], preferred_element_type=jnp.float32)
    h = jnp.maximum(h + b1_ref[...], 0.0)                       # [TD, 32]
    norm = jnp.sqrt(jnp.sum(h * h, axis=-1, keepdims=True))
    xn = h / jnp.maximum(norm, 1e-12)                           # F.normalize(p=2)
    h_ref[...] = h
    xn_ref[...] = xn


# -----------------------------------------------------------------------------
# Kernel B: AGNN propagation (online masked softmax over src blocks) fused with
#           lin2 + log_softmax, lane-dense [TD, 128] output.
# -----------------------------------------------------------------------------
def agnn_out_kernel(beta_ref, xn_dst_ref, xn_src_ref, h_src_ref, adj_ref,
                    w2_ref, b2_ref, out_ref, m_sc, l_sc, acc_sc):
    j = pl.program_id(1)

    @pl.when(j == 0)
    def _init():
        m_sc[...] = jnp.full_like(m_sc, NEG)
        l_sc[...] = jnp.zeros_like(l_sc)
        acc_sc[...] = jnp.zeros_like(acc_sc)

    # beta folded into the small query block (O(TD*32)), not the [TD,TS] scores.
    q = beta_ref[0] * xn_dst_ref[...]                            # [TD, 32]
    # Gram block: contract feature axis of both operands (no explicit transpose).
    s = lax.dot_general(q, xn_src_ref[...],
                        dimension_numbers=(((1,), (1,)), ((), ())),
                        preferred_element_type=jnp.float32)      # [TD, TS]

    # int8 adjacency is a pure mask; cast in-register, single select pass.
    mask = adj_ref[...].astype(jnp.float32) > 0.0
    s = jnp.where(mask, s, NEG)

    # online (flash-style) softmax update
    m_prev = m_sc[...]
    m_new = jnp.maximum(m_prev, jnp.max(s, axis=-1, keepdims=True))
    alpha = jnp.exp(m_prev - m_new)
    p = jnp.exp(s - m_new)                   # masked entries underflow to 0
    l_sc[...] = alpha * l_sc[...] + jnp.sum(p, axis=-1, keepdims=True)
    acc_sc[...] = alpha * acc_sc[...] + jnp.dot(
        p, h_src_ref[...], preferred_element_type=jnp.float32)
    m_sc[...] = m_new

    @pl.when(j == pl.num_programs(1) - 1)
    def _finalize():
        h2 = acc_sc[...] * pl.reciprocal(l_sc[...], approx=True)          # [TD, 32]
        z = jnp.dot(h2, w2_ref[...],
                    preferred_element_type=jnp.float32) + b2_ref[...]     # [TD, 128]
        # padded logits were set to -1e30 via b2 padding -> don't affect max / sum
        zm = jnp.max(z, axis=-1, keepdims=True)
        lse = jnp.log(jnp.sum(jnp.exp(z - zm), axis=-1, keepdims=True)) + zm
        out_ref[...] = z - lse


# -----------------------------------------------------------------------------
# Wrapper
# -----------------------------------------------------------------------------
def _round_up(x, m):
    return (x + m - 1) // m * m


def net_forward(x, adj, w1, b1, w2, b2, beta, *, tile_dst=128, tile_src=128):
    n = x.shape[0]
    b1 = b1.reshape(1, HIDDEN).astype(jnp.float32)
    b2 = b2.reshape(1, NUM_CLASSES).astype(jnp.float32)

    n_pad = _round_up(max(n, 1), math.lcm(tile_dst, tile_src))

    # ---- host-side padding / packing ----
    xp = jnp.zeros((n_pad, F_PAD), jnp.float32).at[:n, :NUM_FEATURES].set(x)
    w1p = jnp.zeros((F_PAD, HIDDEN), jnp.float32).at[:NUM_FEATURES, :].set(w1)
    # adjacency as int8 mask (quarter the HBM/VMEM traffic of f32)
    adjp = jnp.zeros((n_pad, n_pad), jnp.int8).at[:n, :n].set(
        (adj > 0).astype(jnp.int8))
    # self loops for padded rows keep every softmax row well defined
    adjp = jnp.maximum(adjp, jnp.eye(n_pad, dtype=jnp.int8))
    # lin2 padded to a lane-dense 128-wide output; pad bias = -1e30 so the
    # padded logits vanish from the log_softmax.
    w2p = jnp.zeros((HIDDEN, OUT_PAD), jnp.float32).at[:, :NUM_CLASSES].set(w2)
    b2p = jnp.full((1, OUT_PAD), NEG, jnp.float32).at[:, :NUM_CLASSES].set(b2)
    beta = beta.reshape(1).astype(jnp.float32)

    cparams_1d = pltpu.CompilerParams(
        dimension_semantics=("parallel",),
        vmem_limit_bytes=48 * 1024 * 1024)
    cparams_2d = pltpu.CompilerParams(
        dimension_semantics=("parallel", "arbitrary"),
        vmem_limit_bytes=48 * 1024 * 1024)

    # ---- Kernel A: h, xn ----
    h, xn = pl.pallas_call(
        lin1_norm_kernel,
        out_shape=(jax.ShapeDtypeStruct((n_pad, HIDDEN), jnp.float32),
                   jax.ShapeDtypeStruct((n_pad, HIDDEN), jnp.float32)),
        grid_spec=pltpu.PrefetchScalarGridSpec(
            num_scalar_prefetch=0,
            grid=(n_pad // tile_dst,),
            in_specs=[
                pl.BlockSpec((tile_dst, F_PAD), lambda i: (i, 0)),
                pl.BlockSpec((F_PAD, HIDDEN), lambda i: (0, 0)),
                pl.BlockSpec((1, HIDDEN), lambda i: (0, 0)),
            ],
            out_specs=[
                pl.BlockSpec((tile_dst, HIDDEN), lambda i: (i, 0)),
                pl.BlockSpec((tile_dst, HIDDEN), lambda i: (i, 0)),
            ]),
        compiler_params=cparams_1d,
    )(xp, w1p, b1)

    # ---- Kernel B: propagation + lin2 + log_softmax ----
    out_pad = pl.pallas_call(
        agnn_out_kernel,
        out_shape=jax.ShapeDtypeStruct((n_pad, OUT_PAD), jnp.float32),
        grid_spec=pltpu.PrefetchScalarGridSpec(
            num_scalar_prefetch=1,                      # beta -> SMEM
            grid=(n_pad // tile_dst, n_pad // tile_src),
            in_specs=[
                pl.BlockSpec((tile_dst, HIDDEN), lambda i, j, beta: (i, 0)),   # xn dst
                pl.BlockSpec((tile_src, HIDDEN), lambda i, j, beta: (j, 0)),   # xn src
                pl.BlockSpec((tile_src, HIDDEN), lambda i, j, beta: (j, 0)),   # h  src
                pl.BlockSpec((tile_dst, tile_src), lambda i, j, beta: (i, j)), # adj int8
                pl.BlockSpec((HIDDEN, OUT_PAD), lambda i, j, beta: (0, 0)),    # w2 pad
                pl.BlockSpec((1, OUT_PAD), lambda i, j, beta: (0, 0)),         # b2 pad
            ],
            out_specs=pl.BlockSpec((tile_dst, OUT_PAD), lambda i, j, beta: (i, 0)),
            scratch_shapes=[
                pltpu.VMEM((tile_dst, 1), jnp.float32),       # m (running max)
                pltpu.VMEM((tile_dst, 1), jnp.float32),       # l (running denom)
                pltpu.VMEM((tile_dst, HIDDEN), jnp.float32),  # acc (P @ h)
            ]),
        compiler_params=cparams_2d,
    )(beta, xn, xn, h, adjp, w2p, b2p)

    return out_pad[:n, :NUM_CLASSES]


# -----------------------------------------------------------------------------
# Pure-JAX reference (float32, matches the PyTorch forward)
# -----------------------------------------------------------------------------
def reference_forward(x, adj, w1, b1, w2, b2, beta):
    h = jnp.maximum(x @ w1 + b1, 0.0)
    xn = h / jnp.maximum(jnp.linalg.norm(h, axis=-1, keepdims=True), 1e-12)
    scores = beta[0] * (xn @ xn.T)
    masked = jnp.where(adj > 0, scores, -1e30)
    m = jnp.max(masked, axis=-1, keepdims=True)
    e = jnp.where(adj > 0, jnp.exp(masked - m), 0.0)
    p = e / jnp.sum(e, axis=-1, keepdims=True)
    h2 = p @ h
    z = h2 @ w2 + b2
    return jax.nn.log_softmax(z, axis=1)


if __name__ == "__main__":
    key = jax.random.PRNGKey(0)
    k_x, k_src, k_dst, k_w1, k_b1, k_w2, k_b2 = jax.random.split(key, 7)

    # --- graph / features (small, deterministic; N not a tile multiple to
    #     exercise the padding path; grid is 2x2 with 128-tiles) ---
    N = 200
    E = 800
    X = jax.random.normal(k_x, (N, NUM_FEATURES), dtype=jnp.float32)
    src = jax.random.randint(k_src, (E,), 0, N)
    dst = jax.random.randint(k_dst, (E,), 0, N)

    # dense adjacency: adj[target, source] = 1, plus self loops (AGNNConv default)
    adj = jnp.zeros((N, N), jnp.float32).at[dst, src].set(1.0)
    adj = jnp.maximum(adj, jnp.eye(N, dtype=jnp.float32))

    # --- deterministic parameters (Linear(100,32), beta=1, Linear(32,2)) ---
    w1 = jax.random.normal(k_w1, (NUM_FEATURES, HIDDEN), jnp.float32) * 0.1
    b1 = jax.random.normal(k_b1, (1, HIDDEN), jnp.float32) * 0.1
    w2 = jax.random.normal(k_w2, (HIDDEN, NUM_CLASSES), jnp.float32) * 0.1
    b2 = jax.random.normal(k_b2, (1, NUM_CLASSES), jnp.float32) * 0.1
    beta = jnp.ones((1,), jnp.float32)          # AGNNConv beta, init 1.0

    out = net_forward(X, adj, w1, b1, w2, b2, beta, tile_dst=128, tile_src=128)
    out = jax.block_until_ready(out)

    ref = reference_forward(X, adj, w1, b1, w2, b2, beta)
    assert out.shape == (N, NUM_CLASSES)
    # tolerance accounts for the approx (EUP) reciprocal in the softmax denom
    assert jnp.allclose(out, ref, atol=5e-3, rtol=5e-3), (
        float(jnp.max(jnp.abs(out - ref))))

    print("KERNEL_OK")
</pallas_src>

<mosaic_0001>
module attributes {stable_mosaic.version = 11 : i64} {
  func.func @lin1_norm_kernel(%arg0: i32, %arg1: memref<128x128xf32, #tpu.memory_space<vmem>>, %arg2: memref<128x32xf32, #tpu.memory_space<vmem>>, %arg3: memref<1x32xf32, #tpu.memory_space<vmem>>, %arg4: memref<128x32xf32, #tpu.memory_space<vmem>>, %arg5: memref<128x32xf32, #tpu.memory_space<vmem>>) attributes {dimension_semantics = [#tpu.dimension_semantics<parallel>], iteration_bounds = array<i64: 2>, scalar_prefetch = 0 : i64, scratch_operands = 0 : i64, tpu.core_type = #tpu.core_type<tc>, window_params = [{transform_indices = @transform_0, window_bounds = array<i64: 128, 128>}, {pipeline_mode = #tpu.pipeline_mode<synchronous>, transform_indices = @transform_1, window_bounds = array<i64: 128, 32>}, {pipeline_mode = #tpu.pipeline_mode<synchronous>, transform_indices = @transform_2, window_bounds = array<i64: 1, 32>}, {transform_indices = @transform_3, window_bounds = array<i64: 128, 32>}, {transform_indices = @transform_4, window_bounds = array<i64: 128, 32>}]} {
    %c0 = arith.constant 0 : index
    %c0_0 = arith.constant 0 : index
    %0 = vector.load %arg1[%c0, %c0_0] : memref<128x128xf32, #tpu.memory_space<vmem>>, vector<128x128xf32>
    %c0_1 = arith.constant 0 : index
    %c0_2 = arith.constant 0 : index
    %1 = vector.load %arg2[%c0_1, %c0_2] : memref<128x32xf32, #tpu.memory_space<vmem>>, vector<128x32xf32>
    %cst = arith.constant dense<0.000000e+00> : vector<128x32xf32>
    %2 = tpu.matmul %0, %1, %cst {dimension_numbers = #tpu.dot_dimension_numbers<[1], [0], [0], [1], [0, 0, 1, 1], [], []>} : vector<128x128xf32>, vector<128x32xf32>, vector<128x32xf32> -> vector<128x32xf32>
    %c0_3 = arith.constant 0 : index
    %c0_4 = arith.constant 0 : index
    %3 = vector.load %arg3[%c0_3, %c0_4] : memref<1x32xf32, #tpu.memory_space<vmem>>, vector<1x32xf32>
    %4 = vector.broadcast %3 : vector<1x32xf32> to vector<128x32xf32>
    %5 = arith.addf %2, %4 : vector<128x32xf32>
    %cst_5 = arith.constant 0.000000e+00 : f32
    %6 = vector.broadcast %cst_5 : f32 to vector<128x32xf32>
    %7 = arith.maximumf %5, %6 : vector<128x32xf32>
    %8 = arith.mulf %7, %7 : vector<128x32xf32>
    %cst_6 = arith.constant dense<0.000000e+00> : vector<128xf32>
    %9 = vector.multi_reduction <add>, %8, %cst_6 [1] : vector<128x32xf32> to vector<128xf32>
    %10 = vector.shape_cast %9 : vector<128xf32> to vector<128x1xf32>
    %11 = math.sqrt %10 : vector<128x1xf32>
    %cst_7 = arith.constant 9.99999996E-13 : f32
    %12 = vector.broadcast %cst_7 : f32 to vector<128x1xf32>
    %13 = arith.maximumf %11, %12 : vector<128x1xf32>
    %14 = vector.broadcast %13 : vector<128x1xf32> to vector<128x32xf32>
    %15 = arith.divf %7, %14 : vector<128x32xf32>
    %c0_8 = arith.constant 0 : index
    %c0_9 = arith.constant 0 : index
    %16 = vector.load %arg4[%c0_8, %c0_9] : memref<128x32xf32, #tpu.memory_space<vmem>>, vector<128x32xf32>
    tpu.vector_store %arg4[%c0_8, %c0_9], %7 {strides = array<i32>} : memref<128x32xf32, #tpu.memory_space<vmem>>, vector<128x32xf32>,
    %c0_10 = arith.constant 0 : index
    %c0_11 = arith.constant 0 : index
    %17 = vector.load %arg5[%c0_10, %c0_11] : memref<128x32xf32, #tpu.memory_space<vmem>>, vector<128x32xf32>
    tpu.vector_store %arg5[%c0_10, %c0_11], %15 {strides = array<i32>} : memref<128x32xf32, #tpu.memory_space<vmem>>, vector<128x32xf32>,
    return
  }
  func.func @transform_0(%arg0: i32) -> (i32, i32) {
    %c0_i32 = arith.constant 0 : i32
    %c0_i32_0 = arith.constant 0 : i32
    return %arg0, %c0_i32 : i32, i32
  }
  func.func @transform_1(%arg0: i32) -> (i32, i32) {
    %c0_i32 = arith.constant 0 : i32
    %c0_i32_0 = arith.constant 0 : i32
    %c0_i32_1 = arith.constant 0 : i32
    return %c0_i32, %c0_i32_0 : i32, i32
  }
  func.func @transform_2(%arg0: i32) -> (i32, i32) {
    %c0_i32 = arith.constant 0 : i32
    %c0_i32_0 = arith.constant 0 : i32
    %c0_i32_1 = arith.constant 0 : i32
    return %c0_i32, %c0_i32_0 : i32, i32
  }
  func.func @transform_3(%arg0: i32) -> (i32, i32) {
    %c0_i32 = arith.constant 0 : i32
    %c0_i32_0 = arith.constant 0 : i32
    return %arg0, %c0_i32 : i32, i32
  }
  func.func @transform_4(%arg0: i32) -> (i32, i32) {
    %c0_i32 = arith.constant 0 : i32
    %c0_i32_0 = arith.constant 0 : i32
    return %arg0, %c0_i32 : i32, i32
  }
}

</mosaic_0001>

<llo_original>
// kernel: tpu_custom_call.1
$region0: #{tpu_custom_call.1}
  #allocation0 [shape = 'u32[]', space=smem, size = 0x4, offset = 0x4, fixed_abs, tag = 'smem constant byte address 0x4 - core index']
  #allocation1 [shape = 'u32[144,128]{1,0:T(1,128)}', space=vmem, size = 0x12000, scoped, tag = 'internal scratch']
  %s0 = inlined_call_operand.hbm [shape: f32[256,128], index: 0, kind: input, shape index: {}]
  %s1 = inlined_call_operand.vmem [shape: f32[128,32], index: 1, kind: input, shape index: {}]
  %s2 = inlined_call_operand.vmem [shape: f32[1,32], index: 2, kind: input, shape index: {}]
  %s3 = inlined_call_operand.vmem [shape: f32[256,32], index: 3, kind: output, shape index: {0}]
  %s4 = inlined_call_operand.vmem [shape: f32[256,32], index: 4, kind: output, shape index: {1}]
  %5 = xla_tuple %s3, %s4
  %s6 = sld [smem:[#allocation0]]
  $region57: #{tpu_custom_call.1} parent=0
    _
  %s8 = ssub.s32 1, %s6
  %s9 = scalar_select 0, %s8, %s6
  $region1: #{tpu_custom_call.1} parent=0
    #allocation2 [shape = 'u8[131072]{0}', space=vmem, size = 0x20000, scoped, tag = 'input window, operand 0']
    #allocation3 [shape = 's32[2]{0}', space=sflag, size = 0x8, scoped, tag = 'scoped memory for tpu_custom_call.1']
    %10 = vsyncpa [#allocation3], 0
    %s11 = scalar_lea.sflag [#allocation3], 1
    %12 = vsyncpa %s11, 0
    loop: start=0, step=1, limit=4
    $region2: #{tpu_custom_call.1} parent=1 // loop_pre_header
      _
    $region3: #{tpu_custom_call.1} parent=1 // loop_header
      %s14 = sphi 0, %s18
      %p15 = scmp.ge.s32.totalorder %s14, 4
      %s24 = sphi 0, %s26
      %s27 = sphi 0, %s24
      %s28 = sphi 0, %s27
      %s44 = sphi 0, %s28
      %s48 = sphi 0, %s48
      %s50 = sphi 0, %s48
      %s51 = sphi 0, %s50
      %s65 = sphi 0, %s51
      %s69 = sphi 0, %s69
      %s71 = sphi 0, %s69
      %s72 = sphi 0, %s71
      %s86 = sphi 0, %s72
      %s92 = sphi 0, %s94
      %s95 = sphi 0, %s92
      %s96 = sphi 0, %s95
      %s112 = sphi 0, %s96
      %s118 = sphi 0, %s120
      %s121 = sphi 0, %s118
      %s122 = sphi 0, %s121
      %s138 = sphi 0, %s122
    $region4: #{tpu_custom_call.1} parent=1 // loop_header_branch
      %17 = sbr.rel (%p15) target = $region8
    $region5: #{tpu_custom_call.1} parent=1 // loop_body
      %s19 = ssub.s32 %s14, 1
      %s20 = ssub.s32 %s14, 2
      %s21 = sadd.s32 %s14, 1
      %s22 = ssub.s32 %s14, %s21
      %p23 = scmp.eq.s32.totalorder %s22, 0
      %s25 = sadd.s32 %s24, 1
      %s26 = scalar_select %p23, %s24, %s25
      %p29 = pneg %p23
      %p30 = scmp.eq.s32.totalorder %s14, 1
      %p31 = por %p29, %p30
      %p32 = scmp.ne.s32.totalorder %s24, %s27
      %p33 = scmp.eq.s32.totalorder %s14, 0
      %p34 = por %p32, %p33
      %p35 = scmp.ne.s32.totalorder %s24, %s27
      %p36 = scmp.eq.s32.totalorder %s19, 1
      %p37 = por %p35, %p36
      %p38 = scmp.ne.s32.totalorder %s27, %s28
      %p39 = scmp.eq.s32.totalorder %s19, 0
      %p40 = por %p38, %p39
      %p41 = scmp.ne.s32.totalorder %s27, %s28
      %p42 = scmp.eq.s32.totalorder %s20, 1
      %p43 = por %p41, %p42
      %p45 = scmp.ne.s32.totalorder %s28, %s44
      %p46 = scmp.eq.s32.totalorder %s20, 0
      %p47 = por %p45, %p46
      %s49 = sadd.s32 %s48, 1
      %p52 = scmp.eq.s32.totalorder %s14, 1
      %p53 = scmp.ne.s32.totalorder %s48, %s50
      %p54 = scmp.eq.s32.totalorder %s14, 0
      %p55 = por %p53, %p54
      %p56 = scmp.ne.s32.totalorder %s48, %s50
      %p57 = scmp.eq.s32.totalorder %s19, 1
      %p58 = por %p56, %p57
      %p59 = scmp.ne.s32.totalorder %s50, %s51
      %p60 = scmp.eq.s32.totalorder %s19, 0
      %p61 = por %p59, %p60
      %p62 = scmp.ne.s32.totalorder %s50, %s51
      %p63 = scmp.eq.s32.totalorder %s20, 1
      %p64 = por %p62, %p63
      %p66 = scmp.ne.s32.totalorder %s51, %s65
      %p67 = scmp.eq.s32.totalorder %s20, 0
      %p68 = por %p66, %p67
      %s70 = sadd.s32 %s69, 1
      %p73 = scmp.eq.s32.totalorder %s14, 1
      %p74 = scmp.ne.s32.totalorder %s69, %s71
      %p75 = scmp.eq.s32.totalorder %s14, 0
      %p76 = por %p74, %p75
      %p77 = scmp.ne.s32.totalorder %s69, %s71
      %p78 = scmp.eq.s32.totalorder %s19, 1
      %p79 = por %p77, %p78
      %p80 = scmp.ne.s32.totalorder %s71, %s72
      %p81 = scmp.eq.s32.totalorder %s19, 0
      %p82 = por %p80, %p81
      %p83 = scmp.ne.s32.totalorder %s71, %s72
      %p84 = scmp.eq.s32.totalorder %s20, 1
      %p85 = por %p83, %p84
      %p87 = scmp.ne.s32.totalorder %s72, %s86
      %p88 = scmp.eq.s32.totalorder %s20, 0
      %p89 = por %p87, %p88
      %s90 = ssub.s32 %s14, %s21
      %p91 = scmp.eq.s32.totalorder %s90, 0
      %s93 = sadd.s32 %s92, 1
      %s94 = scalar_select %p91, %s92, %s93
      %p97 = pneg %p91
      %p98 = scmp.eq.s32.totalorder %s14, 1
      %p99 = por %p97, %p98
      %p100 = scmp.ne.s32.totalorder %s92, %s95
      %p101 = scmp.eq.s32.totalorder %s14, 0
      %p102 = por %p100, %p101
      %p103 = scmp.ne.s32.totalorder %s92, %s95
      %p104 = scmp.eq.s32.totalorder %s19, 1
      %p105 = por %p103, %p104
      %p106 = scmp.ne.s32.totalorder %s95, %s96
      %p107 = scmp.eq.s32.totalorder %s19, 0
      %p108 = por %p106, %p107
      %p109 = scmp.ne.s32.totalorder %s95, %s96
      %p110 = scmp.eq.s32.totalorder %s20, 1
      %p111 = por %p109, %p110
      %p113 = scmp.ne.s32.totalorder %s96, %s112
      %p114 = scmp.eq.s32.totalorder %s20, 0
      %p115 = por %p113, %p114
      %s116 = ssub.s32 %s14, %s21
      %p117 = scmp.eq.s32.totalorder %s116, 0
      %s119 = sadd.s32 %s118, 1
      %s120 = scalar_select %p117, %s118, %s119
      %p123 = pneg %p117
      %p124 = scmp.eq.s32.totalorder %s14, 1
      %p125 = por %p123, %p124
      %p126 = scmp.ne.s32.totalorder %s118, %s121
      %p127 = scmp.eq.s32.totalorder %s14, 0
      %p128 = por %p126, %p127
      %p129 = scmp.ne.s32.totalorder %s118, %s121
      %p130 = scmp.eq.s32.totalorder %s19, 1
      %p131 = por %p129, %p130
      %p132 = scmp.ne.s32.totalorder %s121, %s122
      %p133 = scmp.eq.s32.totalorder %s19, 0
      %p134 = por %p132, %p133
      %p135 = scmp.ne.s32.totalorder %s121, %s122
      %p136 = scmp.eq.s32.totalorder %s20, 1
      %p137 = por %p135, %p136
      %p139 = scmp.ne.s32.totalorder %s122, %s138
      %p140 = scmp.eq.s32.totalorder %s20, 0
      %p141 = por %p139, %p140
      %p142 = scmp.le.s32.totalorder 1, %s14
      %p143 = scmp.lt.s32.totalorder %s14, 3
      %p144 = pnand %p142, %p143
      %p145 = pneg %p144
      // Predicated region
      $region9: #{tpu_custom_call.1} parent=5 // pred_check
        _
      $region10: #{tpu_custom_call.1} parent=5 // pred_check_branch
        %147 = sbr.rel (%p144) target = $region12
      $region11: #{tpu_custom_call.1} parent=5 // pred_region
        %s148 = ssub.s32 %s14, 1
        // Predicated region
        $region13: #{tpu_custom_call.1} parent=11 // pred_check
          %p149 = pneg %p61
        $region14: #{tpu_custom_call.1} parent=11 // pred_check_branch
          %151 = sbr.rel (%p149) target = $region16
        $region15: #{tpu_custom_call.1} parent=11 // pred_region
          _
        $region16: #{tpu_custom_call.1} parent=11 // pred_fallthru
          _
        // Predicated region
        $region17: #{tpu_custom_call.1} parent=11 // pred_check
          %p152 = pneg %p82
        $region18: #{tpu_custom_call.1} parent=11 // pred_check_branch
          %154 = sbr.rel (%p152) target = $region20
        $region19: #{tpu_custom_call.1} parent=11 // pred_region
          _
        $region20: #{tpu_custom_call.1} parent=11 // pred_fallthru
          _
      $region12: #{tpu_custom_call.1} parent=5 // pred_fallthru
        _
      %p155 = scmp.lt.s32.totalorder %s14, 2
      // Predicated region
      $region21: #{tpu_custom_call.1} parent=5 // pred_check
        %p156 = pneg %p155
      $region22: #{tpu_custom_call.1} parent=5 // pred_check_branch
        %158 = sbr.rel (%p156) target = $region24
      $region23: #{tpu_custom_call.1} parent=5 // pred_region
        // Predicated region
        $region25: #{tpu_custom_call.1} parent=23 // pred_check
          %p159 = pneg %p34
        $region26: #{tpu_custom_call.1} parent=23 // pred_check_branch
          %161 = sbr.rel (%p159) target = $region28
        $region27: #{tpu_custom_call.1} parent=23 // pred_region
          %s162 = sand.u32 %s24, 1
          %s163 = scalar_lea.sflag [#allocation3], %s162
          %s164 = sand.u32 %s24, 1
          %s165 = smul.addr %s164, 128
          %s166 = scalar_lea.vmem [#allocation2], %s165
          %s167 = smul.u32 16, %s14
          %s169 = ssub.s32 2048, 2048
          %170 = vsyncadd %s163, %s169
          %s171 = smul.addr %s167, 128
          %s172 = scalar_lea.hbm %s0, %s171
          %s173 = sshll.u32 %s166, 4
          %s174 = int_to_ptr.vmem [resolvable:$true] %s173
          %179 = dma.hbm_to_vmem [thread:$0]  %s172, 2048, %s174, %s163, 128, 128, 8
        $region28: #{tpu_custom_call.1} parent=23 // pred_fallthru
          _
      $region24: #{tpu_custom_call.1} parent=5 // pred_fallthru
        _
      %p180 = scmp.le.s32.totalorder 1, %s14
      %p181 = scmp.lt.s32.totalorder %s14, 3
      %p182 = pnand %p180, %p181
      %p183 = pneg %p182
      // Predicated region
      $region29: #{tpu_custom_call.1} parent=5 // pred_check
        _
      $region30: #{tpu_custom_call.1} parent=5 // pred_check_branch
        %185 = sbr.rel (%p182) target = $region32
      $region31: #{tpu_custom_call.1} parent=5 // pred_region
        %s186 = ssub.s32 %s14, 1
        %s187 = sand.u32 %s27, 1
        %s188 = scalar_lea.sflag [#allocation3], %s187
        %s189 = sand.u32 %s27, 1
        %s190 = smul.addr %s189, 128
        %s191 = scalar_lea.vmem [#allocation2], %s190
        // Predicated region
        $region33: #{tpu_custom_call.1} parent=31 // pred_check
          %p192 = pneg %p40
        $region34: #{tpu_custom_call.1} parent=31 // pred_check_branch
          %194 = sbr.rel (%p192) target = $region36
        $region35: #{tpu_custom_call.1} parent=31 // pred_region
          %195 = dma.done %s188, 2048
        $region36: #{tpu_custom_call.1} parent=31 // pred_fallthru
          _
        %s196 = sand.u32 %s27, 1
        %s197 = scalar_lea.sflag [#allocation3], %s196
        %s198 = sand.u32 %s27, 1
        %s199 = smul.addr %s198, 128
        %s200 = scalar_lea.vmem [#allocation2], %s199
        %p201 = pneg %p40
        %p202 = pneg %p37
        %p203 = pneg %p61
        %p204 = pneg %p58
        %p205 = pneg %p82
        %p206 = pneg %p79
        %p207 = pneg %p108
        %p208 = pneg %p105
        %s209 = smul.u32 16, %s19
        %p210 = scmp.lt.s32.totalorder %s209, 31
        %s211 = scalar_select %p210, %s209, 31
        %s212 = smul.addr %s211, 8
        %s213 = scalar_lea.vmem %s3, %s212
        %p214 = pneg %p134
        %p215 = pneg %p131
        %s216 = smul.u32 16, %s19
        %p217 = scmp.lt.s32.totalorder %s216, 31
        %s218 = scalar_select %p217, %s216, 31
        %s219 = smul.addr %s218, 8
        %s220 = scalar_lea.vmem %s4, %s219
        %s221 = smul.u32 16, %s19
        %s222 = smul.u32 16, %s19
        %p223 = scmp.lt.s32.totalorder %s222, 31
        %s224 = scalar_select %p223, %s222, 31
        %s225 = smul.addr %s224, 8
        %s226 = scalar_lea.vmem %s3, %s225
        %s227 = smul.u32 16, %s19
        %s228 = smul.u32 16, %s19
        %p229 = scmp.lt.s32.totalorder %s228, 31
        %s230 = scalar_select %p229, %s228, 31
        %s231 = smul.addr %s230, 8
        %s232 = scalar_lea.vmem %s4, %s231
        %s233 = smul.u32 16, %s19
        %v234 = vld [vmem:[%s191] sm:$0xff]
        %v235 = vld [vmem:[%s191 + $0x8] sm:$0xff]
        %v236 = vld [vmem:[%s191 + $0x10] sm:$0xff]
        %v237 = vld [vmem:[%s191 + $0x18] sm:$0xff]
        %v238 = vld [vmem:[%s191 + $0x20] sm:$0xff]
        %v239 = vld [vmem:[%s191 + $0x28] sm:$0xff]
        %v240 = vld [vmem:[%s191 + $0x30] sm:$0xff]
        %v241 = vld [vmem:[%s191 + $0x38] sm:$0xff]
        %v242 = vld [vmem:[%s191 + $0x40] sm:$0xff]
        %v243 = vld [vmem:[%s191 + $0x48] sm:$0xff]
        %v244 = vld [vmem:[%s191 + $0x50] sm:$0xff]
        %v245 = vld [vmem:[%s191 + $0x58] sm:$0xff]
        %v246 = vld [vmem:[%s191 + $0x60] sm:$0xff]
        %v247 = vld [vmem:[%s191 + $0x68] sm:$0xff]
        %v248 = vld [vmem:[%s191 + $0x70] sm:$0xff]
        %v249 = vld [vmem:[%s191 + $0x78] sm:$0xff]
        %v250 = vld [vmem:[%s1] sm:$0xff]
        %v251 = vld [vmem:[%s1 + $0x8] sm:$0xff]
        %v252 = vld [vmem:[%s1 + $0x10] sm:$0xff]
        %v253 = vld [vmem:[%s1 + $0x18] sm:$0xff]
        %v254 = vld [vmem:[%s1 + $0x20] sm:$0xff]
        %v255 = vld [vmem:[%s1 + $0x28] sm:$0xff]
        %v256 = vld [vmem:[%s1 + $0x30] sm:$0xff]
        %v257 = vld [vmem:[%s1 + $0x38] sm:$0xff]
        %v258 = vld [vmem:[%s1 + $0x40] sm:$0xff]
        %v259 = vld [vmem:[%s1 + $0x48] sm:$0xff]
        %v260 = vld [vmem:[%s1 + $0x50] sm:$0xff]
        %v261 = vld [vmem:[%s1 + $0x58] sm:$0xff]
        %v262 = vld [vmem:[%s1 + $0x60] sm:$0xff]
        %v263 = vld [vmem:[%s1 + $0x68] sm:$0xff]
        %v264 = vld [vmem:[%s1 + $0x70] sm:$0xff]
        %v265 = vld [vmem:[%s1 + $0x78] sm:$0xff]
        %v266 = vld [vmem:[%s2] sm:$0x1]
        %v268 = vlaneseq
        %v269 = vshrl.u32 %v268, 7
        %v270 = vsub.s32 0, %v269
        %v271 = vrot.slane %v266, %v270
        %273 = vmatprep.subr.mxu0 0.0
        %274 = vmatpush1.msra.mxu0 %v265
        %275 = vmatprep.subr.mxu0 0.0
        %276 = vmatpush1.msra.mxu0 %v264
        %277 = vmatprep.subr.mxu0 0.0
        %278 = vmatpush1.msra.mxu0 %v263
        %279 = vmatprep.subr.mxu0 0.0
        %280 = vmatpush1.msra.mxu0 %v262
        %281 = vmatprep.subr.mxu0 0.0
        %282 = vmatpush1.msra.mxu0 %v261
        %283 = vmatprep.subr.mxu0 0.0
        %284 = vmatpush1.msra.mxu0 %v260
        %285 = vmatprep.subr.mxu0 0.0
        %286 = vmatpush1.msra.mxu0 %v259
        %287 = vmatprep.subr.mxu0 0.0
        %288 = vmatpush1.msra.mxu0 %v258
        %289 = vmatprep.subr.mxu0 0.0
        %290 = vmatpush1.msra.mxu0 %v257
        %291 = vmatprep.subr.mxu0 0.0
        %292 = vmatpush1.msra.mxu0 %v256
        %293 = vmatprep.subr.mxu0 0.0
        %294 = vmatpush1.msra.mxu0 %v255
        %295 = vmatprep.subr.mxu0 0.0
        %296 = vmatpush1.msra.mxu0 %v254
        %297 = vmatprep.subr.mxu0 0.0
        %298 = vmatpush1.msra.mxu0 %v253
        %299 = vmatprep.subr.mxu0 0.0
        %300 = vmatpush1.msra.mxu0 %v252
        %301 = vmatprep.subr.mxu0 0.0
        %302 = vmatpush1.msra.mxu0 %v251
        %303 = vmatprep.subr.mxu0 0.0
        %304 = vmatpush1.msra.mxu0 %v250
        %305 = vmatprep.subr.mxu0 0.0
        %306 = vmatpush2.msra.mxu0 0.0
        %307 = vmatprep.subr.mxu0 0.0
        %308 = vmatpush2.msra.mxu0 0.0
        %309 = vmatprep.subr.mxu0 0.0
        %310 = vmatpush2.msra.mxu0 0.0
        %311 = vmatprep.subr.mxu0 0.0
        %312 = vmatpush2.msra.mxu0 0.0
        %313 = vmatprep.subr.mxu0 0.0
        %314 = vmatpush2.msra.mxu0 0.0
        %315 = vmatprep.subr.mxu0 0.0
        %316 = vmatpush2.msra.mxu0 0.0
        %317 = vmatprep.subr.mxu0 0.0
        %318 = vmatpush2.msra.mxu0 0.0
        %319 = vmatprep.subr.mxu0 0.0
        %320 = vmatpush2.msra.mxu0 0.0
        %321 = vmatprep.subr.mxu0 0.0
        %322 = vmatpush2.msra.mxu0 0.0
        %323 = vmatprep.subr.mxu0 0.0
        %324 = vmatpush2.msra.mxu0 0.0
        %325 = vmatprep.subr.mxu0 0.0
        %326 = vmatpush2.msra.mxu0 0.0
        %327 = vmatprep.subr.mxu0 0.0
        %328 = vmatpush2.msra.mxu0 0.0
        %329 = vmatprep.subr.mxu0 0.0
        %330 = vmatpush2.msra.mxu0 0.0
        %331 = vmatprep.subr.mxu0 0.0
        %332 = vmatpush2.msra.mxu0 0.0
        %333 = vmatprep.subr.mxu0 0.0
        %334 = vmatpush2.msra.mxu0 0.0
        %335 = vmatprep.subr.mxu0 0.0
        %336 = vmatpush2.msra.mxu0 0.0
        %337 = vmatprep.mubr.f32.mxu0 0.0
        %338 = vmatmul.mubr.f32.gmra.mxu0 %v234
        %v339 = vpop.f32.mrf.mxu0
        %v340 = vadd.f32 %v271, %v339
        %v341 = vpop.f32.mrf.mxu0
        %342 = vmatprep.mubr.f32.mxu0 0.0
        %343 = vmatmul.mubr.f32.gmra.mxu0 %v235
        %v344 = vpop.f32.mrf.mxu0
        %v345 = vadd.f32 %v271, %v344
        %v346 = vpop.f32.mrf.mxu0
        %347 = vmatprep.mubr.f32.mxu0 0.0
        %348 = vmatmul.mubr.f32.gmra.mxu0 %v236
        %v349 = vpop.f32.mrf.mxu0
        %v350 = vadd.f32 %v271, %v349
        %v351 = vpop.f32.mrf.mxu0
        %352 = vmatprep.mubr.f32.mxu0 0.0
        %353 = vmatmul.mubr.f32.gmra.mxu0 %v237
        %v354 = vpop.f32.mrf.mxu0
        %v355 = vadd.f32 %v271, %v354
        %v356 = vpop.f32.mrf.mxu0
        %357 = vmatprep.mubr.f32.mxu0 0.0
        %358 = vmatmul.mubr.f32.gmra.mxu0 %v238
        %v359 = vpop.f32.mrf.mxu0
        %v360 = vadd.f32 %v271, %v359
        %v361 = vpop.f32.mrf.mxu0
        %362 = vmatprep.mubr.f32.mxu0 0.0
        %363 = vmatmul.mubr.f32.gmra.mxu0 %v239
        %v364 = vpop.f32.mrf.mxu0
        %v365 = vadd.f32 %v271, %v364
        %v366 = vpop.f32.mrf.mxu0
        %367 = vmatprep.mubr.f32.mxu0 0.0
        %368 = vmatmul.mubr.f32.gmra.mxu0 %v240
        %v369 = vpop.f32.mrf.mxu0
        %v370 = vadd.f32 %v271, %v369
        %v371 = vpop.f32.mrf.mxu0
        %372 = vmatprep.mubr.f32.mxu0 0.0
        %373 = vmatmul.mubr.f32.gmra.mxu0 %v241
        %v374 = vpop.f32.mrf.mxu0
        %v375 = vadd.f32 %v271, %v374
        %v376 = vpop.f32.mrf.mxu0
        %377 = vmatprep.mubr.f32.mxu0 0.0
        %378 = vmatmul.mubr.f32.gmra.mxu0 %v242
        %v379 = vpop.f32.mrf.mxu0
        %v380 = vadd.f32 %v271, %v379
        %v381 = vpop.f32.mrf.mxu0
        %382 = vmatprep.mubr.f32.mxu0 0.0
        %383 = vmatmul.mubr.f32.gmra.mxu0 %v243
        %v384 = vpop.f32.mrf.mxu0
        %v385 = vadd.f32 %v271, %v384
        %v386 = vpop.f32.mrf.mxu0
        %387 = vmatprep.mubr.f32.mxu0 0.0
        %388 = vmatmul.mubr.f32.gmra.mxu0 %v244
        %v389 = vpop.f32.mrf.mxu0
        %v390 = vadd.f32 %v271, %v389
        %v391 = vpop.f32.mrf.mxu0
        %392 = vmatprep.mubr.f32.mxu0 0.0
        %393 = vmatmul.mubr.f32.gmra.mxu0 %v245
        %v394 = vpop.f32.mrf.mxu0
        %v395 = vadd.f32 %v271, %v394
        %v396 = vpop.f32.mrf.mxu0
        %397 = vmatprep.mubr.f32.mxu0 0.0
        %398 = vmatmul.mubr.f32.gmra.mxu0 %v246
        %v399 = vpop.f32.mrf.mxu0
        %v400 = vadd.f32 %v271, %v399
        %v401 = vpop.f32.mrf.mxu0
        %402 = vmatprep.mubr.f32.mxu0 0.0
        %403 = vmatmul.mubr.f32.gmra.mxu0 %v247
        %v404 = vpop.f32.mrf.mxu0
        %v405 = vadd.f32 %v271, %v404
        %v406 = vpop.f32.mrf.mxu0
        %407 = vmatprep.mubr.f32.mxu0 0.0
        %408 = vmatmul.mubr.f32.gmra.mxu0 %v248
        %v409 = vpop.f32.mrf.mxu0
        %v410 = vadd.f32 %v271, %v409
        %v411 = vpop.f32.mrf.mxu0
        %412 = vmatprep.mubr.f32.mxu0 0.0
        %413 = vmatmul.mubr.f32.gmra.mxu0 %v249
        %v414 = vpop.f32.mrf.mxu0
        %v415 = vadd.f32 %v271, %v414
        %v416 = vpop.f32.mrf.mxu0
        %417 = vdwg.mxu0
        %v418 = vmax.f32 %v340, 0.0
        %v419 = vmax.f32 %v345, 0.0
        %v420 = vmax.f32 %v350, 0.0
        %v421 = vmax.f32 %v355, 0.0
        %v422 = vmax.f32 %v360, 0.0
        %v423 = vmax.f32 %v365, 0.0
        %v424 = vmax.f32 %v370, 0.0
        %v425 = vmax.f32 %v375, 0.0
        %v426 = vmax.f32 %v380, 0.0
        %v427 = vmax.f32 %v385, 0.0
        %v428 = vmax.f32 %v390, 0.0
        %v429 = vmax.f32 %v395, 0.0
        %v430 = vmax.f32 %v400, 0.0
        %v431 = vmax.f32 %v405, 0.0
        %v432 = vmax.f32 %v410, 0.0
        %v433 = vmax.f32 %v415, 0.0
        %v434 = vmul.f32 %v418, %v418
        %v435 = vmul.f32 %v419, %v419
        %v436 = vmul.f32 %v420, %v420
        %v437 = vmul.f32 %v421, %v421
        %v438 = vmul.f32 %v422, %v422
        %v439 = vmul.f32 %v423, %v423
        %v440 = vmul.f32 %v424, %v424
        %v441 = vmul.f32 %v425, %v425
        %v442 = vmul.f32 %v426, %v426
        %v443 = vmul.f32 %v427, %v427
        %v444 = vmul.f32 %v428, %v428
        %v445 = vmul.f32 %v429, %v429
        %v446 = vmul.f32 %v430, %v430
        %v447 = vmul.f32 %v431, %v431
        %v448 = vmul.f32 %v432, %v432
        %v449 = vmul.f32 %v433, %v433
        %vm450 = vcmask 261120
        %v451 = vsel %vm450, %v434, 0.0
        %452 = vadd.xlane.f32.xlu0 %v451
        %v453 = vpop.xlane.xlu0 %452
        %v454 = vsel %vm450, %v435, 0.0
        %455 = vadd.xlane.f32.xlu0 %v454
        %v456 = vpop.xlane.xlu0 %455
        %v457 = vsel %vm450, %v436, 0.0
        %458 = vadd.xlane.f32.xlu0 %v457
        %v459 = vpop.xlane.xlu0 %458
        %v460 = vsel %vm450, %v437, 0.0
        %461 = vadd.xlane.f32.xlu0 %v460
        %v462 = vpop.xlane.xlu0 %461
        %v463 = vsel %vm450, %v438, 0.0
        %464 = vadd.xlane.f32.xlu0 %v463
        %v465 = vpop.xlane.xlu0 %464
        %v466 = vsel %vm450, %v439, 0.0
        %467 = vadd.xlane.f32.xlu0 %v466
        %v468 = vpop.xlane.xlu0 %467
        %v469 = vsel %vm450, %v440, 0.0
        %470 = vadd.xlane.f32.xlu0 %v469
        %v471 = vpop.xlane.xlu0 %470
        %v472 = vsel %vm450, %v441, 0.0
        %473 = vadd.xlane.f32.xlu0 %v472
        %v474 = vpop.xlane.xlu0 %473
        %v475 = vsel %vm450, %v442, 0.0
        %476 = vadd.xlane.f32.xlu0 %v475
        %v477 = vpop.xlane.xlu0 %476
        %v478 = vsel %vm450, %v443, 0.0
        %479 = vadd.xlane.f32.xlu0 %v478
        %v480 = vpop.xlane.xlu0 %479
        %v481 = vsel %vm450, %v444, 0.0
        %482 = vadd.xlane.f32.xlu0 %v481
        %v483 = vpop.xlane.xlu0 %482
        %v484 = vsel %vm450, %v445, 0.0
        %485 = vadd.xlane.f32.xlu0 %v484
        %v486 = vpop.xlane.xlu0 %485
        %v487 = vsel %vm450, %v446, 0.0
        %488 = vadd.xlane.f32.xlu0 %v487
        %v489 = vpop.xlane.xlu0 %488
        %v490 = vsel %vm450, %v447, 0.0
        %491 = vadd.xlane.f32.xlu0 %v490
        %v492 = vpop.xlane.xlu0 %491
        %v493 = vsel %vm450, %v448, 0.0
        %494 = vadd.xlane.f32.xlu0 %v493
        %v495 = vpop.xlane.xlu0 %494
        %v496 = vsel %vm450, %v449, 0.0
        %497 = vadd.xlane.f32.xlu0 %v496
        %v498 = vpop.xlane.xlu0 %497
        %v499 = vrsqrt.pop %v453
        %v500 = vmul.f32 %v453, %v499
        %vm501 = vcmp.eq.f32.partialorder %v453, inf
        %v502 = vsel %vm501, %v453, %v500
        %vm503 = vcmp.eq.f32.partialorder %v453, 0.0
        %v504 = vand.u32 %v453, 2147483648
        %v505 = vsel %vm503, %v504, %v502
        %v506 = vrsqrt.pop %v456
        %v507 = vmul.f32 %v456, %v506
        %vm508 = vcmp.eq.f32.partialorder %v456, inf
        %v509 = vsel %vm508, %v456, %v507
        %vm510 = vcmp.eq.f32.partialorder %v456, 0.0
        %v511 = vand.u32 %v456, 2147483648
        %v512 = vsel %vm510, %v511, %v509
        %v513 = vrsqrt.pop %v459
        %v514 = vmul.f32 %v459, %v513
        %vm515 = vcmp.eq.f32.partialorder %v459, inf
        %v516 = vsel %vm515, %v459, %v514
        %vm517 = vcmp.eq.f32.partialorder %v459, 0.0
        %v518 = vand.u32 %v459, 2147483648
        %v519 = vsel %vm517, %v518, %v516
        %v520 = vrsqrt.pop %v462
        %v521 = vmul.f32 %v462, %v520
        %vm522 = vcmp.eq.f32.partialorder %v462, inf
        %v523 = vsel %vm522, %v462, %v521
        %vm524 = vcmp.eq.f32.partialorder %v462, 0.0
        %v525 = vand.u32 %v462, 2147483648
        %v526 = vsel %vm524, %v525, %v523
        %v527 = vrsqrt.pop %v465
        %v528 = vmul.f32 %v465, %v527
        %vm529 = vcmp.eq.f32.partialorder %v465, inf
        %v530 = vsel %vm529, %v465, %v528
        %vm531 = vcmp.eq.f32.partialorder %v465, 0.0
        %v532 = vand.u32 %v465, 2147483648
        %v533 = vsel %vm531, %v532, %v530
        %v534 = vrsqrt.pop %v468
        %v535 = vmul.f32 %v468, %v534
        %vm536 = vcmp.eq.f32.partialorder %v468, inf
        %v537 = vsel %vm536, %v468, %v535
        %vm538 = vcmp.eq.f32.partialorder %v468, 0.0
        %v539 = vand.u32 %v468, 2147483648
        %v540 = vsel %vm538, %v539, %v537
        %v541 = vrsqrt.pop %v471
        %v542 = vmul.f32 %v471, %v541
        %vm543 = vcmp.eq.f32.partialorder %v471, inf
        %v544 = vsel %vm543, %v471, %v542
        %vm545 = vcmp.eq.f32.partialorder %v471, 0.0
        %v546 = vand.u32 %v471, 2147483648
        %v547 = vsel %vm545, %v546, %v544
        %v548 = vrsqrt.pop %v474
        %v549 = vmul.f32 %v474, %v548
        %vm550 = vcmp.eq.f32.partialorder %v474, inf
        %v551 = vsel %vm550, %v474, %v549
        %vm552 = vcmp.eq.f32.partialorder %v474, 0.0
        %v553 = vand.u32 %v474, 2147483648
        %v554 = vsel %vm552, %v553, %v551
        %v555 = vrsqrt.pop %v477
        %v556 = vmul.f32 %v477, %v555
        %vm557 = vcmp.eq.f32.partialorder %v477, inf
        %v558 = vsel %vm557, %v477, %v556
        %vm559 = vcmp.eq.f32.partialorder %v477, 0.0
        %v560 = vand.u32 %v477, 2147483648
        %v561 = vsel %vm559, %v560, %v558
        %v562 = vrsqrt.pop %v480
        %v563 = vmul.f32 %v480, %v562
        %vm564 = vcmp.eq.f32.partialorder %v480, inf
        %v565 = vsel %vm564, %v480, %v563
        %vm566 = vcmp.eq.f32.partialorder %v480, 0.0
        %v567 = vand.u32 %v480, 2147483648
        %v568 = vsel %vm566, %v567, %v565
        %v569 = vrsqrt.pop %v483
        %v570 = vmul.f32 %v483, %v569
        %vm571 = vcmp.eq.f32.partialorder %v483, inf
        %v572 = vsel %vm571, %v483, %v570
        %vm573 = vcmp.eq.f32.partialorder %v483, 0.0
        %v574 = vand.u32 %v483, 2147483648
        %v575 = vsel %vm573, %v574, %v572
        %v576 = vrsqrt.pop %v486
        %v577 = vmul.f32 %v486, %v576
        %vm578 = vcmp.eq.f32.partialorder %v486, inf
        %v579 = vsel %vm578, %v486, %v577
        %vm580 = vcmp.eq.f32.partialorder %v486, 0.0
        %v581 = vand.u32 %v486, 2147483648
        %v582 = vsel %vm580, %v581, %v579
        %v583 = vrsqrt.pop %v489
        %v584 = vmul.f32 %v489, %v583
        %vm585 = vcmp.eq.f32.partialorder %v489, inf
        %v586 = vsel %vm585, %v489, %v584
        %vm587 = vcmp.eq.f32.partialorder %v489, 0.0
        %v588 = vand.u32 %v489, 2147483648
        %v589 = vsel %vm587, %v588, %v586
        %v590 = vrsqrt.pop %v492
        %v591 = vmul.f32 %v492, %v590
        %vm592 = vcmp.eq.f32.partialorder %v492, inf
        %v593 = vsel %vm592, %v492, %v591
        %vm594 = vcmp.eq.f32.partialorder %v492, 0.0
        %v595 = vand.u32 %v492, 2147483648
        %v596 = vsel %vm594, %v595, %v593
        %v597 = vrsqrt.pop %v495
        %v598 = vmul.f32 %v495, %v597
        %vm599 = vcmp.eq.f32.partialorder %v495, inf
        %v600 = vsel %vm599, %v495, %v598
        %vm601 = vcmp.eq.f32.partialorder %v495, 0.0
        %v602 = vand.u32 %v495, 2147483648
        %v603 = vsel %vm601, %v602, %v600
        %v604 = vrsqrt.pop %v498
        %v605 = vmul.f32 %v498, %v604
        %vm606 = vcmp.eq.f32.partialorder %v498, inf
        %v607 = vsel %vm606, %v498, %v605
        %vm608 = vcmp.eq.f32.partialorder %v498, 0.0
        %v609 = vand.u32 %v498, 2147483648
        %v610 = vsel %vm608, %v609, %v607
        %v611 = vmax.f32 %v505, 1e-12
        %v612 = vmax.f32 %v512, 1e-12
        %v613 = vmax.f32 %v519, 1e-12
        %v614 = vmax.f32 %v526, 1e-12
        %v615 = vmax.f32 %v533, 1e-12
        %v616 = vmax.f32 %v540, 1e-12
        %v617 = vmax.f32 %v547, 1e-12
        %v618 = vmax.f32 %v554, 1e-12
        %v619 = vmax.f32 %v561, 1e-12
        %v620 = vmax.f32 %v568, 1e-12
        %v621 = vmax.f32 %v575, 1e-12
        %v622 = vmax.f32 %v582, 1e-12
        %v623 = vmax.f32 %v589, 1e-12
        %v624 = vmax.f32 %v596, 1e-12
        %v625 = vmax.f32 %v603, 1e-12
        %v626 = vmax.f32 %v610, 1e-12
        %v627 = vrcp.pop %v611
        %v628 = vmul.f32 %v418, %v627
        %v629 = vrcp.pop %v612
        %v630 = vmul.f32 %v419, %v629
        %v631 = vrcp.pop %v613
        %v632 = vmul.f32 %v420, %v631
        %v633 = vrcp.pop %v614
        %v634 = vmul.f32 %v421, %v633
        %v635 = vrcp.pop %v615
        %v636 = vmul.f32 %v422, %v635
        %v637 = vrcp.pop %v616
        %v638 = vmul.f32 %v423, %v637
        %v639 = vrcp.pop %v617
        %v640 = vmul.f32 %v424, %v639
        %v641 = vrcp.pop %v618
        %v642 = vmul.f32 %v425, %v641
        %v643 = vrcp.pop %v619
        %v644 = vmul.f32 %v426, %v643
        %v645 = vrcp.pop %v620
        %v646 = vmul.f32 %v427, %v645
        %v647 = vrcp.pop %v621
        %v648 = vmul.f32 %v428, %v647
        %v649 = vrcp.pop %v622
        %v650 = vmul.f32 %v429, %v649
        %v651 = vrcp.pop %v623
        %v652 = vmul.f32 %v430, %v651
        %v653 = vrcp.pop %v624
        %v654 = vmul.f32 %v431, %v653
        %v655 = vrcp.pop %v625
        %v656 = vmul.f32 %v432, %v655
        %v657 = vrcp.pop %v626
        %v658 = vmul.f32 %v433, %v657
        %659 = vst.msk [vmem:[%s226] sm:$0xff] %vm450, %v418
        %660 = vst.msk [vmem:[%s226 + $0x8] sm:$0xff] %vm450, %v419
        %661 = vst.msk [vmem:[%s226 + $0x10] sm:$0xff] %vm450, %v420
        %662 = vst.msk [vmem:[%s226 + $0x18] sm:$0xff] %vm450, %v421
        %663 = vst.msk [vmem:[%s226 + $0x20] sm:$0xff] %vm450, %v422
        %664 = vst.msk [vmem:[%s226 + $0x28] sm:$0xff] %vm450, %v423
        %665 = vst.msk [vmem:[%s226 + $0x30] sm:$0xff] %vm450, %v424
        %666 = vst.msk [vmem:[%s226 + $0x38] sm:$0xff] %vm450, %v425
        %667 = vst.msk [vmem:[%s226 + $0x40] sm:$0xff] %vm450, %v426
        %668 = vst.msk [vmem:[%s226 + $0x48] sm:$0xff] %vm450, %v427
        %669 = vst.msk [vmem:[%s226 + $0x50] sm:$0xff] %vm450, %v428
        %670 = vst.msk [vmem:[%s226 + $0x58] sm:$0xff] %vm450, %v429
        %671 = vst.msk [vmem:[%s226 + $0x60] sm:$0xff] %vm450, %v430
        %672 = vst.msk [vmem:[%s226 + $0x68] sm:$0xff] %vm450, %v431
        %673 = vst.msk [vmem:[%s226 + $0x70] sm:$0xff] %vm450, %v432
        %674 = vst.msk [vmem:[%s226 + $0x78] sm:$0xff] %vm450, %v433
        %675 = vst.msk [vmem:[%s232] sm:$0xff] %vm450, %v628
        %676 = vst.msk [vmem:[%s232 + $0x8] sm:$0xff] %vm450, %v630
        %677 = vst.msk [vmem:[%s232 + $0x10] sm:$0xff] %vm450, %v632
        %678 = vst.msk [vmem:[%s232 + $0x18] sm:$0xff] %vm450, %v634
        %679 = vst.msk [vmem:[%s232 + $0x20] sm:$0xff] %vm450, %v636
        %680 = vst.msk [vmem:[%s232 + $0x28] sm:$0xff] %vm450, %v638
        %681 = vst.msk [vmem:[%s232 + $0x30] sm:$0xff] %vm450, %v640
        %682 = vst.msk [vmem:[%s232 + $0x38] sm:$0xff] %vm450, %v642
        %683 = vst.msk [vmem:[%s232 + $0x40] sm:$0xff] %vm450, %v644
        %684 = vst.msk [vmem:[%s232 + $0x48] sm:$0xff] %vm450, %v646
        %685 = vst.msk [vmem:[%s232 + $0x50] sm:$0xff] %vm450, %v648
        %686 = vst.msk [vmem:[%s232 + $0x58] sm:$0xff] %vm450, %v650
        %687 = vst.msk [vmem:[%s232 + $0x60] sm:$0xff] %vm450, %v652
        %688 = vst.msk [vmem:[%s232 + $0x68] sm:$0xff] %vm450, %v654
        %689 = vst.msk [vmem:[%s232 + $0x70] sm:$0xff] %vm450, %v656
        %690 = vst.msk [vmem:[%s232 + $0x78] sm:$0xff] %vm450, %v658
        %s691 = smul.u32 16, %s19
        %p692 = scmp.lt.s32.totalorder %s691, 31
        %s693 = scalar_select %p692, %s691, 31
        %s694 = smul.addr %s693, 8
        %s695 = scalar_lea.vmem %s3, %s694
        %s696 = smul.u32 16, %s19
        %p697 = scmp.lt.s32.totalorder %s696, 31
        %s698 = scalar_select %p697, %s696, 31
        %s699 = smul.addr %s698, 8
        %s700 = scalar_lea.vmem %s4, %s699
        // Predicated region
        $region37: #{tpu_custom_call.1} parent=31 // pred_check
          %p701 = pneg %p105
        $region38: #{tpu_custom_call.1} parent=31 // pred_check_branch
          %703 = sbr.rel (%p701) target = $region40
        $region39: #{tpu_custom_call.1} parent=31 // pred_region
          %s704 = smul.u32 16, %s19
        $region40: #{tpu_custom_call.1} parent=31 // pred_fallthru
          _
        // Predicated region
        $region41: #{tpu_custom_call.1} parent=31 // pred_check
          %p705 = pneg %p131
        $region42: #{tpu_custom_call.1} parent=31 // pred_check_branch
          %707 = sbr.rel (%p705) target = $region44
        $region43: #{tpu_custom_call.1} parent=31 // pred_region
          %s708 = smul.u32 16, %s19
        $region44: #{tpu_custom_call.1} parent=31 // pred_fallthru
          _
      $region32: #{tpu_custom_call.1} parent=5 // pred_fallthru
        _
      %p709 = scmp.le.s32.totalorder 2, %s14
      // Predicated region
      $region45: #{tpu_custom_call.1} parent=5 // pred_check
        %p710 = pneg %p709
      $region46: #{tpu_custom_call.1} parent=5 // pred_check_branch
        %712 = sbr.rel (%p710) target = $region48
      $region47: #{tpu_custom_call.1} parent=5 // pred_region
        %s713 = ssub.s32 %s14, 2
        // Predicated region
        $region49: #{tpu_custom_call.1} parent=47 // pred_check
          %p714 = pneg %p111
        $region50: #{tpu_custom_call.1} parent=47 // pred_check_branch
          %716 = sbr.rel (%p714) target = $region52
        $region51: #{tpu_custom_call.1} parent=47 // pred_region
          %s717 = smul.u32 16, %s20
          %p718 = scmp.lt.s32.totalorder %s717, 31
          %s719 = scalar_select %p718, %s717, 31
          %s720 = smul.addr %s719, 8
          %s721 = scalar_lea.vmem %s3, %s720
        $region52: #{tpu_custom_call.1} parent=47 // pred_fallthru
          _
        // Predicated region
        $region53: #{tpu_custom_call.1} parent=47 // pred_check
          %p722 = pneg %p137
        $region54: #{tpu_custom_call.1} parent=47 // pred_check_branch
          %724 = sbr.rel (%p722) target = $region56
        $region55: #{tpu_custom_call.1} parent=47 // pred_region
          %s725 = smul.u32 16, %s20
          %p726 = scmp.lt.s32.totalorder %s725, 31
          %s727 = scalar_select %p726, %s725, 31
          %s728 = smul.addr %s727, 8
          %s729 = scalar_lea.vmem %s4, %s728
        $region56: #{tpu_custom_call.1} parent=47 // pred_fallthru
          _
      $region48: #{tpu_custom_call.1} parent=5 // pred_fallthru
        _
    $region6: #{tpu_custom_call.1} parent=1 // loop_footer
      %s18 = sadd.s32 1, %s14
    $region7: #{tpu_custom_call.1} parent=1 // loop_footer_branch
      %13 = sbr.rel target = $region3
    $region8: #{tpu_custom_call.1} parent=1 // loop_exit
      _
    %730 = vsyncpa [#allocation3], 1
    %s731 = scalar_lea.sflag [#allocation3], 1
    %732 = vsyncpa %s731, 1

</llo_original>
